<compile_context>
chip_gen: v5e
topology: v5e:2x2
jax: 0.10.0
libtpu: 0.0.40
codegen_flags: <defaults>
</compile_context>

<pallas_src>
import jax
import jax.numpy as jnp
from jax import lax
from jax.experimental import pallas as pl
from jax.experimental.pallas import tpu as pltpu


def _round_up(x, m):
    return ((x + m - 1) // m) * m


def _embedding_kernel(ids_ref, w_ref, out_ref):
    # ids_ref : VMEM (tile_rows, 1)   int32 -- token ids for this row tile
    # w_ref   : VMEM (vocab, emb)           -- full embedding table
    # out_ref : VMEM (tile_rows, emb)       -- gathered rows for this tile
    tile_rows = out_ref.shape[0]
    vocab = w_ref.shape[0]

    ids = ids_ref[...]                                             # (tile_rows, 1)
    col = lax.broadcasted_iota(jnp.int32, (tile_rows, vocab), 1)   # (tile_rows, vocab)
    one_hot = (ids == col).astype(w_ref.dtype)                     # vectorized, VPU

    # One MXU matmul replaces batch x dynamic-slice gathers + masked stores.
    rows = jnp.dot(one_hot, w_ref[...], preferred_element_type=jnp.float32)
    out_ref[...] = rows.astype(out_ref.dtype)


def embedding_forward(inputs, weight, *, tile_rows=None):
    """inputs: int [seq, batch]; weight: [vocab, emb] -> [seq, batch, emb]."""
    seq, batch = inputs.shape
    vocab, emb = weight.shape
    n = seq * batch

    # Fat, sublane-aligned row tiles; single tile for small problems.
    if tile_rows is None:
        tile_rows = 512 if n > 512 else _round_up(n, 8)
    n_pad = _round_up(n, tile_rows)

    ids = inputs.reshape(n).astype(jnp.int32)
    if n_pad != n:
        ids = jnp.concatenate([ids, jnp.zeros((n_pad - n,), jnp.int32)])
    ids = ids.reshape(n_pad, 1)

    grid = (n_pad // tile_rows,)

    # Explicit VMEM budget: 2x weight (double-buffered invariant block),
    # 2x output tile, 2x id tile, plus slack.  Keeps v5e's 16 MiB scoped
    # default from shrinking tiles and stays within v7x's 64 MiB.
    itemsize = jnp.dtype(weight.dtype).itemsize
    vmem_need = (2 * vocab * emb * itemsize
                 + 2 * tile_rows * emb * itemsize
                 + 2 * tile_rows * 4
                 + (2 << 20))
    vmem_limit = int(min(max(vmem_need, 16 << 20), 64 << 20))

    grid_spec = pltpu.PrefetchScalarGridSpec(
        num_scalar_prefetch=0,
        grid=grid,
        in_specs=[
            pl.BlockSpec((tile_rows, 1), lambda i: (i, 0)),   # ids row tile
            pl.BlockSpec((vocab, emb), lambda i: (0, 0)),     # full table, VMEM-resident
        ],
        out_specs=pl.BlockSpec((tile_rows, emb), lambda i: (i, 0)),
    )

    out_flat = pl.pallas_call(
        _embedding_kernel,
        out_shape=jax.ShapeDtypeStruct((n_pad, emb), weight.dtype),
        grid_spec=grid_spec,
        compiler_params=pltpu.CompilerParams(
            dimension_semantics=("parallel",),   # independent row tiles
            vmem_limit_bytes=vmem_limit,
        ),
    )(ids, weight)

    return out_flat[:n].reshape(seq, batch, emb)


if __name__ == "__main__":
    # config / module shapes (synthetic, deterministic init)
    vocab_size = 32          # input_size
    embedding_size = 128     # config['embedding_size']
    seq_len = 8
    batch = 2

    key = jax.random.PRNGKey(0)
    k_w, k_idx = jax.random.split(key)

    # nn.Embedding default init ~ N(0, 1)
    weight = jax.random.normal(k_w, (vocab_size, embedding_size), dtype=jnp.float32)
    inputs = jax.random.randint(k_idx, (seq_len, batch), 0, vocab_size, dtype=jnp.int32)

    out = embedding_forward(inputs, weight)
    out = jax.block_until_ready(out)

    # reference check against plain JAX gather
    ref = weight[inputs]  # [seq, batch, emb]
    assert out.shape == (seq_len, batch, embedding_size)
    assert jnp.allclose(out, ref), "mismatch vs reference embedding lookup"

    print("KERNEL_OK")
</pallas_src>

<mosaic_0001>
module attributes {stable_mosaic.version = 11 : i64} {
  func.func @_embedding_kernel(%arg0: i32, %arg1: memref<16x1xi32, #tpu.memory_space<vmem>>, %arg2: memref<32x128xf32, #tpu.memory_space<vmem>>, %arg3: memref<16x128xf32, #tpu.memory_space<vmem>>) attributes {dimension_semantics = [#tpu.dimension_semantics<parallel>], iteration_bounds = array<i64: 1>, scalar_prefetch = 0 : i64, scratch_operands = 0 : i64, tpu.core_type = #tpu.core_type<tc>, window_params = [{transform_indices = @transform_0, window_bounds = array<i64: 16, 1>}, {pipeline_mode = #tpu.pipeline_mode<synchronous>, transform_indices = @transform_1, window_bounds = array<i64: 32, 128>}, {transform_indices = @transform_2, window_bounds = array<i64: 16, 128>}]} {
    %c0 = arith.constant 0 : index
    %c0_0 = arith.constant 0 : index
    %0 = vector.load %arg1[%c0, %c0_0] : memref<16x1xi32, #tpu.memory_space<vmem>>, vector<16x1xi32>
    %1 = tpu.iota {dimensions = array<i32: 1>} : vector<16x32xi32>
    %2 = vector.broadcast %0 : vector<16x1xi32> to vector<16x32xi32>
    %3 = arith.cmpi eq, %2, %1 : vector<16x32xi32>
    %4 = arith.extui %3 : vector<16x32xi1> to vector<16x32xi32>
    %5 = arith.sitofp %4 : vector<16x32xi32> to vector<16x32xf32>
    %c0_1 = arith.constant 0 : index
    %c0_2 = arith.constant 0 : index
    %6 = vector.load %arg2[%c0_1, %c0_2] : memref<32x128xf32, #tpu.memory_space<vmem>>, vector<32x128xf32>
    %cst = arith.constant dense<0.000000e+00> : vector<16x128xf32>
    %7 = tpu.matmul %5, %6, %cst {dimension_numbers = #tpu.dot_dimension_numbers<[1], [0], [0], [1], [0, 0, 1, 1], [], []>} : vector<16x32xf32>, vector<32x128xf32>, vector<16x128xf32> -> vector<16x128xf32>
    %c0_3 = arith.constant 0 : index
    %c0_4 = arith.constant 0 : index
    %8 = vector.load %arg3[%c0_3, %c0_4] : memref<16x128xf32, #tpu.memory_space<vmem>>, vector<16x128xf32>
    tpu.vector_store %arg3[%c0_3, %c0_4], %7 {strides = array<i32>} : memref<16x128xf32, #tpu.memory_space<vmem>>, vector<16x128xf32>,
    return
  }
  func.func @transform_0(%arg0: i32) -> (i32, i32) {
    %c0_i32 = arith.constant 0 : i32
    %c0_i32_0 = arith.constant 0 : i32
    return %arg0, %c0_i32 : i32, i32
  }
  func.func @transform_1(%arg0: i32) -> (i32, i32) {
    %c0_i32 = arith.constant 0 : i32
    %c0_i32_0 = arith.constant 0 : i32
    %c0_i32_1 = arith.constant 0 : i32
    return %c0_i32, %c0_i32_0 : i32, i32
  }
  func.func @transform_2(%arg0: i32) -> (i32, i32) {
    %c0_i32 = arith.constant 0 : i32
    %c0_i32_0 = arith.constant 0 : i32
    return %arg0, %c0_i32 : i32, i32
  }
}

</mosaic_0001>

<llo_original>
// kernel: tpu_custom_call.1
$region0: #{tpu_custom_call.1}
  #allocation0 [shape = 'u32[]', space=smem, size = 0x4, offset = 0x4, fixed_abs, tag = 'smem constant byte address 0x4 - core index']
  #allocation1 [shape = 'u32[72,128]{1,0:T(1,128)}', space=vmem, size = 0x9000, scoped, tag = 'internal scratch']
  %s0 = inlined_call_operand.vmem [shape: s32[16,1], index: 0, kind: input, shape index: {}]
  %s1 = inlined_call_operand.hbm [shape: f32[32,128], index: 1, kind: input, shape index: {}]
  %s2 = inlined_call_operand.hbm [shape: f32[16,128], index: 2, kind: output, shape index: {}]
  %s3 = sld [smem:[#allocation0]]
  $region22: #{tpu_custom_call.1} parent=0
    _
  %s5 = ssub.s32 1, %s3
  %s6 = scalar_select 0, %s5, %s3
  $region1: #{tpu_custom_call.1} parent=0
    #allocation2 [shape = 'u8[16384]{0}', space=vmem, size = 0x4000, scoped, tag = 'input window, operand 1, single buffered']
    #allocation3 [shape = 's32[1]{0}', space=sflag, size = 0x4, scoped, tag = 'scoped memory for tpu_custom_call.1']
    #allocation4 [shape = 's32[1]{0}', space=sflag, size = 0x4, scoped, tag = 'scoped memory for tpu_custom_call.1']
    #allocation5 [shape = 'u8[8192]{0}', space=vmem, size = 0x2000, scoped, tag = 'output window, operand 0, single buffered']
    %7 = vsyncpa [#allocation3], 0
    %8 = vsyncpa [#allocation4], 0
    // Predicated region
    $region2: #{tpu_custom_call.1} parent=1 // pred_check
      _
    $region3: #{tpu_custom_call.1} parent=1 // pred_check_branch
      %10 = sbr.rel (0) target = $region5
    $region4: #{tpu_custom_call.1} parent=1 // pred_region
      _
    $region5: #{tpu_custom_call.1} parent=1 // pred_fallthru
      _
    // Predicated region
    $region6: #{tpu_custom_call.1} parent=1 // pred_check
      _
    $region7: #{tpu_custom_call.1} parent=1 // pred_check_branch
      %12 = sbr.rel (0) target = $region9
    $region8: #{tpu_custom_call.1} parent=1 // pred_region
      %14 = vsyncadd [#allocation3], 0
      %s15 = sshll.u32 %s1, 4
      %s16 = int_to_ptr.hbm [resolvable:$true] %s15
      %s17 = sshll.u32 [#allocation2], 4
      %s18 = int_to_ptr.vmem [resolvable:$true] %s17
      %23 = dma.hbm_to_vmem [thread:$0]  %s16, 512, %s18, [#allocation3], 128, 128, 8
    $region9: #{tpu_custom_call.1} parent=1 // pred_fallthru
      _
    // Predicated region
    $region10: #{tpu_custom_call.1} parent=1 // pred_check
      _
    $region11: #{tpu_custom_call.1} parent=1 // pred_check_branch
      %25 = sbr.rel (0) target = $region13
    $region12: #{tpu_custom_call.1} parent=1 // pred_region
      %27 = dma.done [#allocation3], 512
    $region13: #{tpu_custom_call.1} parent=1 // pred_fallthru
      _
    %v28 = vld [vmem:[%s0] sm:$0xff]
    %v29 = vld [vmem:[%s0 + $0x8] sm:$0xff]
    %v30 = vlaneseq
    %v31 = vand.u32 %v30, 127
    %32 = vset.pattern.permute.xlu0 0
    %33 = vperm.xlu0 %32, %v28
    %v34 = vpop.permute.xlu0 %33
    %35 = vset.pattern.permute.xlu0 0
    %36 = vperm.xlu0 %35, %v29
    %v37 = vpop.permute.xlu0 %36
    %vm38 = vcmp.eq.s32.totalorder %v34, %v31
    %vm39 = vcmp.eq.s32.totalorder %v37, %v31
    %v40 = vsel %vm38, 1, 0
    %v41 = vsel %vm39, 1, 0
    %v42 = vcvt.s32.f32 %v40
    %v43 = vcvt.s32.f32 %v41
    %v44 = vld [vmem:[#allocation2] sm:$0xff]
    %v45 = vld [vmem:[#allocation2 + $0x8] sm:$0xff]
    %v46 = vld [vmem:[#allocation2 + $0x10] sm:$0xff]
    %v47 = vld [vmem:[#allocation2 + $0x18] sm:$0xff]
    %vm48 = vcmask 261120
    %v50 = vsel %vm48, %v42, 0
    %v53 = vsel %vm48, %v43, 0
    %55 = vmatpush.msra.mxu0 0.0
    %56 = vmatpush.msra.mxu0 0.0
    %57 = vmatpush.msra.mxu0 0.0
    %58 = vmatpush.msra.mxu0 0.0
    %59 = vmatpush.msra.mxu0 0.0
    %60 = vmatpush.msra.mxu0 0.0
    %61 = vmatpush.msra.mxu0 0.0
    %62 = vmatpush.msra.mxu0 0.0
    %63 = vmatpush.msra.mxu0 0.0
    %64 = vmatpush.msra.mxu0 0.0
    %65 = vmatpush.msra.mxu0 0.0
    %66 = vmatpush.msra.mxu0 0.0
    %67 = vmatpush.msra.mxu0 %v47
    %68 = vmatpush.msra.mxu0 %v46
    %69 = vmatpush.msra.mxu0 %v45
    %70 = vmatpush.msra.mxu0 %v44
    %71 = vmatmul.f32.gmra.mxu0 %v50
    %v72 = vpop.f32.mrf.mxu0
    %v73 = vadd.f32 0.0, %v72
    %74 = vmatmul.f32.gmra.mxu0 %v53
    %v75 = vpop.f32.mrf.mxu0
    %v76 = vadd.f32 0.0, %v75
    %77 = vdwg.mxu0
    %78 = vst [vmem:[#allocation5] sm:$0xff] %v73
    %79 = vst [vmem:[#allocation5 + $0x8] sm:$0xff] %v76
    // Predicated region
    $region14: #{tpu_custom_call.1} parent=1 // pred_check
      _
    $region15: #{tpu_custom_call.1} parent=1 // pred_check_branch
      %81 = sbr.rel (0) target = $region17
    $region16: #{tpu_custom_call.1} parent=1 // pred_region
      %83 = vsyncadd [#allocation4], 0
      %s84 = sshll.u32 [#allocation5], 4
      %s85 = int_to_ptr.vmem [resolvable:$true] %s84
      %s86 = sshll.u32 %s2, 4
      %s87 = int_to_ptr.hbm [resolvable:$true] %s86
      %92 = dma.vmem_to_hbm [thread:$0]  %s85, 256, %s87, [#allocation4], 128, 128, 8
    $region17: #{tpu_custom_call.1} parent=1 // pred_fallthru
      _
    // Predicated region
    $region18: #{tpu_custom_call.1} parent=1 // pred_check
      _
    $region19: #{tpu_custom_call.1} parent=1 // pred_check_branch
      %94 = sbr.rel (0) target = $region21
    $region20: #{tpu_custom_call.1} parent=1 // pred_region
      %96 = dma.done [#allocation4], 256
    $region21: #{tpu_custom_call.1} parent=1 // pred_fallthru
      _
    %97 = vsyncpa [#allocation3], 1
    %98 = vsyncpa [#allocation4], 1

</llo_original>
